<compile_context>
chip_gen: v5e
topology: v5e:2x2
jax: 0.10.0
libtpu: 0.0.40
codegen_flags: <defaults>
</compile_context>

<pallas_src>
import jax
import jax.numpy as jnp
from jax.experimental import pallas as pl
from jax.experimental.pallas import tpu as pltpu


def _rgcn_kernel(nz_ref, a_ref, h_ref, w_ref, b_ref, o_ref):
    d = pl.program_id(0)          # dst-node tile (parallel)
    r = pl.program_id(1)          # relation      (reduction axis, last)

    @pl.when(r == 0)
    def _init():
        o_ref[...] = jnp.zeros_like(o_ref)

    @pl.when(nz_ref[d, r] > 0)    # skip MXU work for all-zero adjacency tiles
    def _accumulate():
        # message + sum-aggregation for relation r on this dst tile:
        #   sum_{edges (s->d, rel=r)} norm * (h[s] @ W_r)  ==  (A_r @ H) @ W_r
        ah = jnp.dot(a_ref[0], h_ref[...], preferred_element_type=jnp.float32)
        o_ref[...] += jnp.dot(ah, w_ref[0], preferred_element_type=jnp.float32)

    @pl.when(r == pl.num_programs(1) - 1)
    def _finalize():
        h = o_ref[...] + b_ref[...]          # bias  (apply_func)
        o_ref[...] = jnp.maximum(h, 0.0)     # activation = relu


def rgcn_layer_pallas(adj, h, weight, bias, *, tile_d=128):
    """adj: [R, N, N] f32 (A[r, dst, src] = edge norm), h: [N, Fin] f32,
    weight: [R, Fin, Fout] f32, bias: [1, Fout] f32  ->  [N, Fout] f32."""
    num_rels, n, _ = adj.shape
    in_feat = h.shape[1]
    out_feat = weight.shape[2]

    # Pad nodes to a multiple of the dst tile (tile_d is a multiple of 128, so the
    # src/lane axis of A is aligned too); pad Fout to 128 lanes for dense stores.
    n_pad = pl.cdiv(n, tile_d) * tile_d
    f_out_pad = pl.cdiv(out_feat, 128) * 128
    d_tiles = n_pad // tile_d

    adj_p = jnp.zeros((num_rels, n_pad, n_pad), jnp.float32).at[:, :n, :n].set(adj)
    # Per-(dst_tile, relation) nonzero mask for compute skipping (scalar prefetch).
    nz = jnp.any(adj_p.reshape(num_rels, d_tiles, tile_d, n_pad) != 0.0, axis=(2, 3))
    nz = nz.T.astype(jnp.int32)                        # [d_tiles, num_rels]

    adj_b = adj_p.astype(jnp.bfloat16)                 # MXU inputs in bf16
    h_b = jnp.zeros((n_pad, in_feat), jnp.bfloat16).at[:n].set(h.astype(jnp.bfloat16))
    w_p = jnp.zeros((num_rels, in_feat, f_out_pad), jnp.float32
                    ).at[:, :, :out_feat].set(weight)
    b_p = jnp.zeros((1, f_out_pad), jnp.float32).at[:, :out_feat].set(bias)

    flops = (2 * num_rels * n_pad * n_pad * in_feat
             + 2 * num_rels * n_pad * in_feat * f_out_pad)
    bytes_accessed = (adj_b.size * 2 + h_b.size * 2 + w_p.size * 4 + b_p.size * 4
                      + n_pad * f_out_pad * 4 + nz.size * 4)

    out = pl.pallas_call(
        _rgcn_kernel,
        out_shape=jax.ShapeDtypeStruct((n_pad, f_out_pad), jnp.float32),
        grid_spec=pltpu.PrefetchScalarGridSpec(
            num_scalar_prefetch=1,
            grid=(d_tiles, num_rels),
            in_specs=[
                pl.BlockSpec((1, tile_d, n_pad), lambda d, r, nz: (r, d, 0)),
                pl.BlockSpec((n_pad, in_feat), lambda d, r, nz: (0, 0)),
                pl.BlockSpec((1, in_feat, f_out_pad), lambda d, r, nz: (r, 0, 0)),
                pl.BlockSpec((1, f_out_pad), lambda d, r, nz: (0, 0)),
            ],
            out_specs=pl.BlockSpec((tile_d, f_out_pad), lambda d, r, nz: (d, 0)),
        ),
        compiler_params=pltpu.CompilerParams(
            dimension_semantics=("parallel", "arbitrary"),
            vmem_limit_bytes=32 * 1024 * 1024,
        ),
        cost_estimate=pl.CostEstimate(
            flops=flops, transcendentals=0, bytes_accessed=bytes_accessed),
    )(nz, adj_b, h_b, w_p, b_p)

    return out[:n, :out_feat]


def xavier_uniform(key, shape, gain):
    # PyTorch xavier_uniform_: fan_in = shape[1]*prod(shape[2:]), fan_out = shape[0]*prod(shape[2:])
    rf = 1
    for dm in shape[2:]:
        rf *= dm
    fan_in, fan_out = shape[1] * rf, shape[0] * rf
    bound = gain * (6.0 / (fan_in + fan_out)) ** 0.5
    return jax.random.uniform(key, shape, jnp.float32, -bound, bound)


if __name__ == "__main__":
    key = jax.random.PRNGKey(0)
    k_w, k_c, k_b, k_h, k_e = jax.random.split(key, 5)

    # Small synthetic problem (homogeneous graph with relation-typed edges).
    N = 200          # number of nodes (not a multiple of 128 -> exercises padding)
    in_feat = 16
    out_feat = 32
    num_rels = 4
    num_bases = 2

    gain = 2.0 ** 0.5  # nn.init.calculate_gain('relu')

    # Parameters (deterministic init, shapes from RGCNLayer.__init__).
    weight_bases = xavier_uniform(k_w, (num_bases, in_feat, out_feat), gain)
    w_comp = xavier_uniform(k_c, (num_rels, num_bases), gain)
    bias = jax.random.uniform(k_b, (1, out_feat), jnp.float32, -0.1, 0.1)

    # Basis decomposition exactly as in the PyTorch forward (including the view quirk).
    w_view = weight_bases.reshape(in_feat, num_bases, out_feat)
    weight = jnp.einsum("rb,ibo->iro", w_comp, w_view).reshape(
        num_rels, in_feat, out_feat)

    # Node features.
    h = jax.random.normal(k_h, (N, in_feat), jnp.float32)

    # Synthetic per-relation adjacency with edge 'norm' = 1/in-degree (per relation).
    raw = jax.random.bernoulli(k_e, p=0.05, shape=(num_rels, N, N)).astype(jnp.float32)
    deg = jnp.sum(raw, axis=2, keepdims=True)                        # in-degree per dst
    norm = jnp.where(deg > 0, 1.0 / jnp.maximum(deg, 1.0), 0.0)
    adj = raw * norm                                                 # A[r, dst, src] = edge norm

    out = rgcn_layer_pallas(adj, h, weight, bias)
    out = jax.block_until_ready(out)

    # Pure-JAX reference with the same bf16 quantization of adj / h as the kernel.
    adj_q = adj.astype(jnp.bfloat16).astype(jnp.float32)
    h_q = h.astype(jnp.bfloat16).astype(jnp.float32)
    ah_ref = jnp.einsum("rds,si->rdi", adj_q, h_q,
                        precision=jax.lax.Precision.HIGHEST)
    ref = jnp.maximum(
        jnp.einsum("rdi,rio->do", ah_ref, weight,
                   precision=jax.lax.Precision.HIGHEST) + bias, 0.0)
    assert jnp.allclose(out, ref, rtol=1e-3, atol=1e-3), float(jnp.max(jnp.abs(out - ref)))

    print("KERNEL_OK")
</pallas_src>

<mosaic_0001>
module attributes {stable_mosaic.version = 11 : i64} {
  func.func @_rgcn_kernel(%arg0: i32, %arg1: i32, %arg2: memref<2x4xi32, #tpu.memory_space<smem>>, %arg3: memref<1x128x256xbf16, #tpu.memory_space<vmem>>, %arg4: memref<256x16xbf16, #tpu.memory_space<vmem>>, %arg5: memref<1x16x128xf32, #tpu.memory_space<vmem>>, %arg6: memref<1x128xf32, #tpu.memory_space<vmem>>, %arg7: memref<128x128xf32, #tpu.memory_space<vmem>>) attributes {dimension_semantics = [#tpu.dimension_semantics<parallel>, #tpu.dimension_semantics<arbitrary>], iteration_bounds = array<i64: 2, 4>, scalar_prefetch = 1 : i64, scratch_operands = 0 : i64, tpu.core_type = #tpu.core_type<tc>, window_params = [{transform_indices = @transform_0, window_bounds = array<i64: 1, 128, 256>}, {pipeline_mode = #tpu.pipeline_mode<synchronous>, transform_indices = @transform_1, window_bounds = array<i64: 256, 16>}, {transform_indices = @transform_2, window_bounds = array<i64: 1, 16, 128>}, {pipeline_mode = #tpu.pipeline_mode<synchronous>, transform_indices = @transform_3, window_bounds = array<i64: 1, 128>}, {transform_indices = @transform_4, window_bounds = array<i64: 128, 128>}]} {
    %c0_i32 = arith.constant 0 : i32
    %0 = arith.cmpi eq, %arg1, %c0_i32 : i32
    %1 = arith.extui %0 : i1 to i32
    %c0_i32_0 = arith.constant 0 : i32
    %2 = arith.cmpi ne, %1, %c0_i32_0 : i32
    scf.if %2 {
      %cst = arith.constant 0.000000e+00 : f32
      %12 = vector.broadcast %cst : f32 to vector<128x128xf32>
      %c0 = arith.constant 0 : index
      %c0_4 = arith.constant 0 : index
      %13 = vector.load %arg7[%c0, %c0_4] : memref<128x128xf32, #tpu.memory_space<vmem>>, vector<128x128xf32>
      tpu.vector_store %arg7[%c0, %c0_4], %12 {strides = array<i32>} : memref<128x128xf32, #tpu.memory_space<vmem>>, vector<128x128xf32>,
    } else {
    }
    %3 = arith.index_cast %arg0 : i32 to index
    %4 = arith.index_cast %arg1 : i32 to index
    %5 = memref.load %arg2[%3, %4] : memref<2x4xi32, #tpu.memory_space<smem>>
    %c0_i32_1 = arith.constant 0 : i32
    %6 = arith.cmpi sgt, %5, %c0_i32_1 : i32
    %7 = arith.extui %6 : i1 to i32
    %c0_i32_2 = arith.constant 0 : i32
    %8 = arith.cmpi ne, %7, %c0_i32_2 : i32
    scf.if %8 {
      %c0 = arith.constant 0 : index
      %c0_4 = arith.constant 0 : index
      %c0_5 = arith.constant 0 : index
      %12 = vector.load %arg3[%c0, %c0_4, %c0_5] : memref<1x128x256xbf16, #tpu.memory_space<vmem>>, vector<1x128x256xbf16>
      %13 = vector.shape_cast %12 : vector<1x128x256xbf16> to vector<128x256xbf16>
      %c0_6 = arith.constant 0 : index
      %c0_7 = arith.constant 0 : index
      %14 = vector.load %arg4[%c0_6, %c0_7] : memref<256x16xbf16, #tpu.memory_space<vmem>>, vector<256x16xbf16>
      %cst = arith.constant dense<0.000000e+00> : vector<128x16xf32>
      %15 = tpu.matmul %13, %14, %cst {dimension_numbers = #tpu.dot_dimension_numbers<[1], [0], [0], [1], [0, 0, 1, 1], [], []>} : vector<128x256xbf16>, vector<256x16xbf16>, vector<128x16xf32> -> vector<128x16xf32>
      %c0_8 = arith.constant 0 : index
      %c0_9 = arith.constant 0 : index
      %16 = vector.load %arg7[%c0_8, %c0_9] : memref<128x128xf32, #tpu.memory_space<vmem>>, vector<128x128xf32>
      %c0_10 = arith.constant 0 : index
      %c0_11 = arith.constant 0 : index
      %c0_12 = arith.constant 0 : index
      %17 = vector.load %arg5[%c0_10, %c0_11, %c0_12] : memref<1x16x128xf32, #tpu.memory_space<vmem>>, vector<1x16x128xf32>
      %18 = vector.shape_cast %17 : vector<1x16x128xf32> to vector<16x128xf32>
      %cst_13 = arith.constant dense<0.000000e+00> : vector<128x128xf32>
      %19 = tpu.matmul %15, %18, %cst_13 {dimension_numbers = #tpu.dot_dimension_numbers<[1], [0], [0], [1], [0, 0, 1, 1], [], []>} : vector<128x16xf32>, vector<16x128xf32>, vector<128x128xf32> -> vector<128x128xf32>
      %20 = arith.addf %16, %19 : vector<128x128xf32>
      %c0_14 = arith.constant 0 : index
      %c0_15 = arith.constant 0 : index
      %21 = vector.load %arg7[%c0_14, %c0_15] : memref<128x128xf32, #tpu.memory_space<vmem>>, vector<128x128xf32>
      tpu.vector_store %arg7[%c0_14, %c0_15], %20 {strides = array<i32>} : memref<128x128xf32, #tpu.memory_space<vmem>>, vector<128x128xf32>,
    } else {
    }
    %c3_i32 = arith.constant 3 : i32
    %9 = arith.cmpi eq, %arg1, %c3_i32 : i32
    %10 = arith.extui %9 : i1 to i32
    %c0_i32_3 = arith.constant 0 : i32
    %11 = arith.cmpi ne, %10, %c0_i32_3 : i32
    scf.if %11 {
      %c0 = arith.constant 0 : index
      %c0_4 = arith.constant 0 : index
      %12 = vector.load %arg7[%c0, %c0_4] : memref<128x128xf32, #tpu.memory_space<vmem>>, vector<128x128xf32>
      %c0_5 = arith.constant 0 : index
      %c0_6 = arith.constant 0 : index
      %13 = vector.load %arg6[%c0_5, %c0_6] : memref<1x128xf32, #tpu.memory_space<vmem>>, vector<1x128xf32>
      %14 = vector.broadcast %13 : vector<1x128xf32> to vector<128x128xf32>
      %15 = arith.addf %12, %14 : vector<128x128xf32>
      %cst = arith.constant 0.000000e+00 : f32
      %16 = vector.broadcast %cst : f32 to vector<128x128xf32>
      %17 = arith.maximumf %15, %16 : vector<128x128xf32>
      %c0_7 = arith.constant 0 : index
      %c0_8 = arith.constant 0 : index
      %18 = vector.load %arg7[%c0_7, %c0_8] : memref<128x128xf32, #tpu.memory_space<vmem>>, vector<128x128xf32>
      tpu.vector_store %arg7[%c0_7, %c0_8], %17 {strides = array<i32>} : memref<128x128xf32, #tpu.memory_space<vmem>>, vector<128x128xf32>,
    } else {
    }
    return
  }
  func.func @transform_0(%arg0: i32, %arg1: i32, %arg2: memref<2x4xi32, #tpu.memory_space<smem>>) -> (i32, i32, i32) {
    %c0_i32 = arith.constant 0 : i32
    %c0_i32_0 = arith.constant 0 : i32
    return %arg1, %arg0, %c0_i32 : i32, i32, i32
  }
  func.func @transform_1(%arg0: i32, %arg1: i32, %arg2: memref<2x4xi32, #tpu.memory_space<smem>>) -> (i32, i32) {
    %c0_i32 = arith.constant 0 : i32
    %c0_i32_0 = arith.constant 0 : i32
    %c0_i32_1 = arith.constant 0 : i32
    return %c0_i32, %c0_i32_0 : i32, i32
  }
  func.func @transform_2(%arg0: i32, %arg1: i32, %arg2: memref<2x4xi32, #tpu.memory_space<smem>>) -> (i32, i32, i32) {
    %c0_i32 = arith.constant 0 : i32
    %c0_i32_0 = arith.constant 0 : i32
    %c0_i32_1 = arith.constant 0 : i32
    return %arg1, %c0_i32, %c0_i32_0 : i32, i32, i32
  }
  func.func @transform_3(%arg0: i32, %arg1: i32, %arg2: memref<2x4xi32, #tpu.memory_space<smem>>) -> (i32, i32) {
    %c0_i32 = arith.constant 0 : i32
    %c0_i32_0 = arith.constant 0 : i32
    %c0_i32_1 = arith.constant 0 : i32
    return %c0_i32, %c0_i32_0 : i32, i32
  }
  func.func @transform_4(%arg0: i32, %arg1: i32, %arg2: memref<2x4xi32, #tpu.memory_space<smem>>) -> (i32, i32) {
    %c0_i32 = arith.constant 0 : i32
    %c0_i32_0 = arith.constant 0 : i32
    return %arg0, %c0_i32 : i32, i32
  }
}

</mosaic_0001>

<llo_original>
// kernel: tpu_custom_call.1
$region0: #{tpu_custom_call.1}
  #allocation0 [shape = 'u32[]', space=smem, size = 0x4, offset = 0x4, fixed_abs, tag = 'smem constant byte address 0x4 - core index']
  #allocation1 [shape = 'u32[72,128]{1,0:T(1,128)}', space=vmem, size = 0x9000, scoped, tag = 'internal scratch']
  #allocation2 [shape = 's32[1]{0}', space=sflag, size = 0x4, scoped, tag = 'scoped memory for tpu_custom_call.1']
  #allocation3 [shape = 'u8[1024]{0}', space=smem, size = 0x400, scoped, tag = 'prefetched SMEM operand 0']
  %s0 = inlined_call_operand.vmem [shape: s32[2,4], index: 0, kind: input, shape index: {}]
  %s1 = inlined_call_operand.hbm [shape: bf16[4,256,256], index: 1, kind: input, shape index: {}]
  %s2 = inlined_call_operand.vmem [shape: bf16[256,16], index: 2, kind: input, shape index: {}]
  %s3 = inlined_call_operand.vmem [shape: f32[4,16,128], index: 3, kind: input, shape index: {}]
  %s4 = inlined_call_operand.vmem [shape: f32[1,128], index: 4, kind: input, shape index: {}]
  %s5 = inlined_call_operand.hbm [shape: f32[256,128], index: 5, kind: output, shape index: {}]
  %s6 = sld [smem:[#allocation0]]
  $region65: #{tpu_custom_call.1} parent=0
    _
  %s8 = ssub.s32 1, %s6
  %s9 = scalar_select 0, %s8, %s6
  %s11 = sshll.u32 %s0, 4
  %s12 = int_to_ptr.vmem [resolvable:$true] %s11
  %14 = dma.vmem_to_smem %s12, 32, [#allocation3], [#allocation2]
  %16 = dma.done [#allocation2], 32
  %17 = sfence
  $region1: #{tpu_custom_call.1} parent=0
    #allocation4 [shape = 'u8[131072]{0}', space=vmem, size = 0x20000, scoped, tag = 'input window, operand 1']
    #allocation5 [shape = 's32[2]{0}', space=sflag, size = 0x8, scoped, tag = 'scoped memory for tpu_custom_call.1']
    #allocation6 [shape = 's32[2]{0}', space=sflag, size = 0x8, scoped, tag = 'scoped memory for tpu_custom_call.1']
    #allocation7 [shape = 'u8[131072]{0}', space=vmem, size = 0x20000, scoped, tag = 'output window, operand 0']
    %18 = vsyncpa [#allocation5], 0
    %s19 = scalar_lea.sflag [#allocation5], 1
    %20 = vsyncpa %s19, 0
    %21 = vsyncpa [#allocation6], 0
    %s22 = scalar_lea.sflag [#allocation6], 1
    %23 = vsyncpa %s22, 0
    loop: start=0, step=1, limit=10
    $region2: #{tpu_custom_call.1} parent=1 // loop_pre_header
      _
    $region3: #{tpu_custom_call.1} parent=1 // loop_header
      %s25 = sphi 0, %s29
      %p26 = scmp.ge.s32.totalorder %s25, 10
      %s32 = sphi 0, %s44
      %s33 = sphi 0, %s40
      %s34 = sphi 0, %s32
      %s35 = sphi 0, %s33
      %s36 = sphi 0, %s34
      %s37 = sphi 0, %s35
      %s49 = sphi 0, %s51
      %s52 = sphi 0, %s49
      %s53 = sphi 0, %s52
      %s69 = sphi 0, %s53
      %s73 = sphi 0, %s73
      %s75 = sphi 0, %s73
      %s76 = sphi 0, %s75
      %s90 = sphi 0, %s76
      %s96 = sphi 0, %s98
      %s99 = sphi 0, %s96
      %s100 = sphi 0, %s99
      %s116 = sphi 0, %s100
      %s120 = sphi 0, %s120
      %s122 = sphi 0, %s120
      %s123 = sphi 0, %s122
      %s137 = sphi 0, %s123
      %s143 = sphi 0, %s145
      %s146 = sphi 0, %s143
      %s147 = sphi 0, %s146
      %s163 = sphi 0, %s147
    $region4: #{tpu_custom_call.1} parent=1 // loop_header_branch
      %28 = sbr.rel (%p26) target = $region8
    $region5: #{tpu_custom_call.1} parent=1 // loop_body
      %s30 = ssub.s32 %s25, 1
      %s31 = ssub.s32 %s25, 2
      %s38 = sadd.s32 1, %s33
      %p39 = scmp.ge.s32.totalorder %s38, 4
      %s40 = scalar_select %p39, 0, %s38
      %s41 = sadd.s32 1, %s32
      %s42 = scalar_select %p39, %s41, %s32
      %p43 = scmp.ge.s32.totalorder %s42, 2
      %s44 = scalar_select %p43, 0, %s42
      %s45 = ssub.s32 %s33, %s40
      %s46 = ssub.s32 %s32, %s44
      %s47 = sor.u32 %s45, %s46
      %p48 = scmp.eq.s32.totalorder %s47, 0
      %s50 = sadd.s32 %s49, 1
      %s51 = scalar_select %p48, %s49, %s50
      %p54 = pneg %p48
      %p55 = scmp.eq.s32.totalorder %s25, 7
      %p56 = por %p54, %p55
      %p57 = scmp.ne.s32.totalorder %s49, %s52
      %p58 = scmp.eq.s32.totalorder %s25, 0
      %p59 = por %p57, %p58
      %p60 = scmp.ne.s32.totalorder %s49, %s52
      %p61 = scmp.eq.s32.totalorder %s30, 7
      %p62 = por %p60, %p61
      %p63 = scmp.ne.s32.totalorder %s52, %s53
      %p64 = scmp.eq.s32.totalorder %s30, 0
      %p65 = por %p63, %p64
      %p66 = scmp.ne.s32.totalorder %s52, %s53
      %p67 = scmp.eq.s32.totalorder %s31, 7
      %p68 = por %p66, %p67
      %p70 = scmp.ne.s32.totalorder %s53, %s69
      %p71 = scmp.eq.s32.totalorder %s31, 0
      %p72 = por %p70, %p71
      %s74 = sadd.s32 %s73, 1
      %p77 = scmp.eq.s32.totalorder %s25, 7
      %p78 = scmp.ne.s32.totalorder %s73, %s75
      %p79 = scmp.eq.s32.totalorder %s25, 0
      %p80 = por %p78, %p79
      %p81 = scmp.ne.s32.totalorder %s73, %s75
      %p82 = scmp.eq.s32.totalorder %s30, 7
      %p83 = por %p81, %p82
      %p84 = scmp.ne.s32.totalorder %s75, %s76
      %p85 = scmp.eq.s32.totalorder %s30, 0
      %p86 = por %p84, %p85
      %p87 = scmp.ne.s32.totalorder %s75, %s76
      %p88 = scmp.eq.s32.totalorder %s31, 7
      %p89 = por %p87, %p88
      %p91 = scmp.ne.s32.totalorder %s76, %s90
      %p92 = scmp.eq.s32.totalorder %s31, 0
      %p93 = por %p91, %p92
      %s94 = ssub.s32 %s33, %s40
      %p95 = scmp.eq.s32.totalorder %s94, 0
      %s97 = sadd.s32 %s96, 1
      %s98 = scalar_select %p95, %s96, %s97
      %p101 = pneg %p95
      %p102 = scmp.eq.s32.totalorder %s25, 7
      %p103 = por %p101, %p102
      %p104 = scmp.ne.s32.totalorder %s96, %s99
      %p105 = scmp.eq.s32.totalorder %s25, 0
      %p106 = por %p104, %p105
      %p107 = scmp.ne.s32.totalorder %s96, %s99
      %p108 = scmp.eq.s32.totalorder %s30, 7
      %p109 = por %p107, %p108
      %p110 = scmp.ne.s32.totalorder %s99, %s100
      %p111 = scmp.eq.s32.totalorder %s30, 0
      %p112 = por %p110, %p111
      %p113 = scmp.ne.s32.totalorder %s99, %s100
      %p114 = scmp.eq.s32.totalorder %s31, 7
      %p115 = por %p113, %p114
      %p117 = scmp.ne.s32.totalorder %s100, %s116
      %p118 = scmp.eq.s32.totalorder %s31, 0
      %p119 = por %p117, %p118
      %s121 = sadd.s32 %s120, 1
      %p124 = scmp.eq.s32.totalorder %s25, 7
      %p125 = scmp.ne.s32.totalorder %s120, %s122
      %p126 = scmp.eq.s32.totalorder %s25, 0
      %p127 = por %p125, %p126
      %p128 = scmp.ne.s32.totalorder %s120, %s122
      %p129 = scmp.eq.s32.totalorder %s30, 7
      %p130 = por %p128, %p129
      %p131 = scmp.ne.s32.totalorder %s122, %s123
      %p132 = scmp.eq.s32.totalorder %s30, 0
      %p133 = por %p131, %p132
      %p134 = scmp.ne.s32.totalorder %s122, %s123
      %p135 = scmp.eq.s32.totalorder %s31, 7
      %p136 = por %p134, %p135
      %p138 = scmp.ne.s32.totalorder %s123, %s137
      %p139 = scmp.eq.s32.totalorder %s31, 0
      %p140 = por %p138, %p139
      %s141 = ssub.s32 %s32, %s44
      %p142 = scmp.eq.s32.totalorder %s141, 0
      %s144 = sadd.s32 %s143, 1
      %s145 = scalar_select %p142, %s143, %s144
      %p148 = pneg %p142
      %p149 = scmp.eq.s32.totalorder %s25, 7
      %p150 = por %p148, %p149
      %p151 = scmp.ne.s32.totalorder %s143, %s146
      %p152 = scmp.eq.s32.totalorder %s25, 0
      %p153 = por %p151, %p152
      %p154 = scmp.ne.s32.totalorder %s143, %s146
      %p155 = scmp.eq.s32.totalorder %s30, 7
      %p156 = por %p154, %p155
      %p157 = scmp.ne.s32.totalorder %s146, %s147
      %p158 = scmp.eq.s32.totalorder %s30, 0
      %p159 = por %p157, %p158
      %p160 = scmp.ne.s32.totalorder %s146, %s147
      %p161 = scmp.eq.s32.totalorder %s31, 7
      %p162 = por %p160, %p161
      %p164 = scmp.ne.s32.totalorder %s147, %s163
      %p165 = scmp.eq.s32.totalorder %s31, 0
      %p166 = por %p164, %p165
      %p167 = scmp.le.s32.totalorder 1, %s25
      %p168 = scmp.lt.s32.totalorder %s25, 9
      %p169 = pnand %p167, %p168
      %p170 = pneg %p169
      // Predicated region
      $region9: #{tpu_custom_call.1} parent=5 // pred_check
        _
      $region10: #{tpu_custom_call.1} parent=5 // pred_check_branch
        %172 = sbr.rel (%p169) target = $region12
      $region11: #{tpu_custom_call.1} parent=5 // pred_region
        %s173 = ssub.s32 %s25, 1
        // Predicated region
        $region13: #{tpu_custom_call.1} parent=11 // pred_check
          %p174 = pneg %p86
        $region14: #{tpu_custom_call.1} parent=11 // pred_check_branch
          %176 = sbr.rel (%p174) target = $region16
        $region15: #{tpu_custom_call.1} parent=11 // pred_region
          _
        $region16: #{tpu_custom_call.1} parent=11 // pred_fallthru
          _
        // Predicated region
        $region17: #{tpu_custom_call.1} parent=11 // pred_check
          %p177 = pneg %p133
        $region18: #{tpu_custom_call.1} parent=11 // pred_check_branch
          %179 = sbr.rel (%p177) target = $region20
        $region19: #{tpu_custom_call.1} parent=11 // pred_region
          _
        $region20: #{tpu_custom_call.1} parent=11 // pred_fallthru
          _
      $region12: #{tpu_custom_call.1} parent=5 // pred_fallthru
        _
      %p180 = scmp.lt.s32.totalorder %s25, 8
      // Predicated region
      $region21: #{tpu_custom_call.1} parent=5 // pred_check
        %p181 = pneg %p180
      $region22: #{tpu_custom_call.1} parent=5 // pred_check_branch
        %183 = sbr.rel (%p181) target = $region24
      $region23: #{tpu_custom_call.1} parent=5 // pred_region
        // Predicated region
        $region25: #{tpu_custom_call.1} parent=23 // pred_check
          %p184 = pneg %p59
        $region26: #{tpu_custom_call.1} parent=23 // pred_check_branch
          %186 = sbr.rel (%p184) target = $region28
        $region27: #{tpu_custom_call.1} parent=23 // pred_region
          %s187 = sand.u32 %s49, 1
          %s188 = scalar_lea.sflag [#allocation5], %s187
          %s189 = sand.u32 %s49, 1
          %s190 = smul.addr %s189, 128
          %s191 = scalar_lea.vmem [#allocation4], %s190
          %s192 = smul.u32 16, %s32
          %194 = vsyncadd %s188, 0
          %s195 = smul.addr %s192, 2
          %s196 = smul.addr %s33, 64
          %s197 = sadd.s32 %s195, %s196
          %s198 = smul.addr %s197, 4
          %s199 = scalar_lea.hbm %s1, %s198
          %s200 = sshll.u32 %s199, 4
          %s201 = int_to_ptr.hbm [resolvable:$true] %s200
          %s202 = sshll.u32 %s191, 4
          %s203 = int_to_ptr.vmem [resolvable:$true] %s202
          %208 = dma.hbm_to_vmem [thread:$0]  %s201, 2048, %s203, %s188, 128, 128, 8
        $region28: #{tpu_custom_call.1} parent=23 // pred_fallthru
          _
        // Predicated region
        $region29: #{tpu_custom_call.1} parent=23 // pred_check
          %p209 = pneg %p106
        $region30: #{tpu_custom_call.1} parent=23 // pred_check_branch
          %211 = sbr.rel (%p209) target = $region32
        $region31: #{tpu_custom_call.1} parent=23 // pred_region
          %p212 = scmp.lt.s32.totalorder %s33, 3
          %s213 = scalar_select %p212, %s33, 3
          %s214 = smul.addr %s213, 2
          %s215 = smul.addr %s214, 8
          %s216 = scalar_lea.vmem %s3, %s215
        $region32: #{tpu_custom_call.1} parent=23 // pred_fallthru
          _
      $region24: #{tpu_custom_call.1} parent=5 // pred_fallthru
        _
      %p217 = scmp.le.s32.totalorder 1, %s25
      %p218 = scmp.lt.s32.totalorder %s25, 9
      %p219 = pnand %p217, %p218
      %p220 = pneg %p219
      // Predicated region
      $region33: #{tpu_custom_call.1} parent=5 // pred_check
        _
      $region34: #{tpu_custom_call.1} parent=5 // pred_check_branch
        %222 = sbr.rel (%p219) target = $region36
      $region35: #{tpu_custom_call.1} parent=5 // pred_region
        %s223 = ssub.s32 %s25, 1
        %s224 = sand.u32 %s52, 1
        %s225 = scalar_lea.sflag [#allocation5], %s224
        %s226 = sand.u32 %s52, 1
        %s227 = smul.addr %s226, 128
        %s228 = scalar_lea.vmem [#allocation4], %s227
        // Predicated region
        $region37: #{tpu_custom_call.1} parent=35 // pred_check
          %p229 = pneg %p65
        $region38: #{tpu_custom_call.1} parent=35 // pred_check_branch
          %231 = sbr.rel (%p229) target = $region40
        $region39: #{tpu_custom_call.1} parent=35 // pred_region
          %233 = dma.done %s225, 2048
        $region40: #{tpu_custom_call.1} parent=35 // pred_fallthru
          _
        %s234 = sand.u32 %s52, 1
        %s235 = scalar_lea.sflag [#allocation5], %s234
        %s236 = sand.u32 %s52, 1
        %s237 = smul.addr %s236, 128
        %s238 = scalar_lea.vmem [#allocation4], %s237
        %p239 = pneg %p65
        %p240 = pneg %p62
        %p241 = pneg %p86
        %p242 = pneg %p83
        %p243 = scmp.lt.s32.totalorder %s35, 3
        %s244 = scalar_select %p243, %s35, 3
        %s245 = smul.addr %s244, 2
        %s246 = smul.addr %s245, 8
        %s247 = scalar_lea.vmem %s3, %s246
        %p248 = pneg %p112
        %p249 = pneg %p109
        %p250 = pneg %p133
        %p251 = pneg %p130
        %p252 = pneg %p159
        %p253 = pneg %p156
        %s254 = sand.u32 %s146, 1
        %s255 = scalar_lea.sflag [#allocation6], %s254
        %s256 = sand.u32 %s146, 1
        %s257 = smul.addr %s256, 128
        %s258 = scalar_lea.vmem [#allocation7], %s257
        %s259 = smul.u32 16, %s34
        %p260 = scmp.lt.s32.totalorder %s35, 3
        %s261 = scalar_select %p260, %s35, 3
        %s262 = smul.addr %s261, 2
        %s263 = smul.addr %s262, 8
        %s264 = scalar_lea.vmem %s3, %s263
        %s265 = smul.u32 16, %s34
        %p266 = scmp.eq.s32.totalorder %s35, 0
        // Predicated region
        $region41: #{tpu_custom_call.1} parent=35 // pred_check
          %p267 = pneg %p266
        $region42: #{tpu_custom_call.1} parent=35 // pred_check_branch
          %269 = sbr.rel (%p267) target = $region44
        $region43: #{tpu_custom_call.1} parent=35 // pred_region
          %270 = vst [vmem:[%s258] sm:$0xff] 0.0
          %271 = vst [vmem:[%s258 + $0x8] sm:$0xff] 0.0
          %272 = vst [vmem:[%s258 + $0x10] sm:$0xff] 0.0
          %273 = vst [vmem:[%s258 + $0x18] sm:$0xff] 0.0
          %274 = vst [vmem:[%s258 + $0x20] sm:$0xff] 0.0
          %275 = vst [vmem:[%s258 + $0x28] sm:$0xff] 0.0
          %276 = vst [vmem:[%s258 + $0x30] sm:$0xff] 0.0
          %277 = vst [vmem:[%s258 + $0x38] sm:$0xff] 0.0
          %278 = vst [vmem:[%s258 + $0x40] sm:$0xff] 0.0
          %279 = vst [vmem:[%s258 + $0x48] sm:$0xff] 0.0
          %280 = vst [vmem:[%s258 + $0x50] sm:$0xff] 0.0
          %281 = vst [vmem:[%s258 + $0x58] sm:$0xff] 0.0
          %282 = vst [vmem:[%s258 + $0x60] sm:$0xff] 0.0
          %283 = vst [vmem:[%s258 + $0x68] sm:$0xff] 0.0
          %284 = vst [vmem:[%s258 + $0x70] sm:$0xff] 0.0
          %285 = vst [vmem:[%s258 + $0x78] sm:$0xff] 0.0
        $region44: #{tpu_custom_call.1} parent=35 // pred_fallthru
          _
        %s286 = sshra.s32 %s35, 7
        %s287 = sand.u32 %s35, 127
        %s288 = sadd.s32 %s286, %s34
        %s289 = smul.u32 %s288, 128
        %s290 = sshra.s32 %s35, 7
        %s291 = sand.u32 %s35, 127
        %s292 = sadd.s32 %s289, %s291
        %s293 = sld [smem:[#allocation3 + %s292]]
        %p294 = scmp.gt.s32.totalorder %s293, 0
        // Predicated region
        $region45: #{tpu_custom_call.1} parent=35 // pred_check
          %p295 = pneg %p294
        $region46: #{tpu_custom_call.1} parent=35 // pred_check_branch
          %297 = sbr.rel (%p295) target = $region48
        $region47: #{tpu_custom_call.1} parent=35 // pred_region
          %v298 = vld [vmem:[%s228] sm:$0xff]
          %v299 = vld [vmem:[%s228 + $0x8] sm:$0xff]
          %v300 = vld [vmem:[%s228 + $0x10] sm:$0xff]
          %v301 = vld [vmem:[%s228 + $0x18] sm:$0xff]
          %v302 = vld [vmem:[%s228 + $0x20] sm:$0xff]
          %v303 = vld [vmem:[%s228 + $0x28] sm:$0xff]
          %v304 = vld [vmem:[%s228 + $0x30] sm:$0xff]
          %v305 = vld [vmem:[%s228 + $0x38] sm:$0xff]
          %v306 = vld [vmem:[%s228 + $0x40] sm:$0xff]
          %v307 = vld [vmem:[%s228 + $0x48] sm:$0xff]
          %v308 = vld [vmem:[%s228 + $0x50] sm:$0xff]
          %v309 = vld [vmem:[%s228 + $0x58] sm:$0xff]
          %v310 = vld [vmem:[%s228 + $0x60] sm:$0xff]
          %v311 = vld [vmem:[%s228 + $0x68] sm:$0xff]
          %v312 = vld [vmem:[%s228 + $0x70] sm:$0xff]
          %v313 = vld [vmem:[%s228 + $0x78] sm:$0xff]
          %v314 = vld [vmem:[%s2] sm:$0xf]
          %v315 = vld [vmem:[%s2 + $0x4] sm:$0xf]
          %v316 = vld [vmem:[%s2 + $0x8] sm:$0xf]
          %v317 = vld [vmem:[%s2 + $0xc] sm:$0xf]
          %v318 = vld [vmem:[%s2 + $0x10] sm:$0xf]
          %v319 = vld [vmem:[%s2 + $0x14] sm:$0xf]
          %v320 = vld [vmem:[%s2 + $0x18] sm:$0xf]
          %v321 = vld [vmem:[%s2 + $0x1c] sm:$0xf]
          %v322 = vld [vmem:[%s2 + $0x20] sm:$0xf]
          %v323 = vld [vmem:[%s2 + $0x24] sm:$0xf]
          %v324 = vld [vmem:[%s2 + $0x28] sm:$0xf]
          %v325 = vld [vmem:[%s2 + $0x2c] sm:$0xf]
          %v326 = vld [vmem:[%s2 + $0x30] sm:$0xf]
          %v327 = vld [vmem:[%s2 + $0x34] sm:$0xf]
          %v328 = vld [vmem:[%s2 + $0x38] sm:$0xf]
          %v329 = vld [vmem:[%s2 + $0x3c] sm:$0xf]
          %v330 = vld [vmem:[%s2 + $0x40] sm:$0xf]
          %v331 = vld [vmem:[%s2 + $0x44] sm:$0xf]
          %v332 = vld [vmem:[%s2 + $0x48] sm:$0xf]
          %v333 = vld [vmem:[%s2 + $0x4c] sm:$0xf]
          %v334 = vld [vmem:[%s2 + $0x50] sm:$0xf]
          %v335 = vld [vmem:[%s2 + $0x54] sm:$0xf]
          %v336 = vld [vmem:[%s2 + $0x58] sm:$0xf]
          %v337 = vld [vmem:[%s2 + $0x5c] sm:$0xf]
          %v338 = vld [vmem:[%s2 + $0x60] sm:$0xf]
          %v339 = vld [vmem:[%s2 + $0x64] sm:$0xf]
          %v340 = vld [vmem:[%s2 + $0x68] sm:$0xf]
          %v341 = vld [vmem:[%s2 + $0x6c] sm:$0xf]
          %v342 = vld [vmem:[%s2 + $0x70] sm:$0xf]
          %v343 = vld [vmem:[%s2 + $0x74] sm:$0xf]
          %v344 = vld [vmem:[%s2 + $0x78] sm:$0xf]
          %v345 = vld [vmem:[%s2 + $0x7c] sm:$0xf]
          %v362 = vunpack.c.l.b16 %v298
          %v363 = vunpack.c.h.b16 %v298
          %v364 = vunpack.c.l.b16 %v299
          %v365 = vunpack.c.h.b16 %v299
          %v366 = vunpack.c.l.b16 %v300
          %v367 = vunpack.c.h.b16 %v300
          %v368 = vunpack.c.l.b16 %v301
          %v369 = vunpack.c.h.b16 %v301
          %v370 = vunpack.c.l.b16 %v302
          %v371 = vunpack.c.h.b16 %v302
          %v372 = vunpack.c.l.b16 %v303
          %v373 = vunpack.c.h.b16 %v303
          %v374 = vunpack.c.l.b16 %v304
          %v375 = vunpack.c.h.b16 %v304
          %v376 = vunpack.c.l.b16 %v305
          %v377 = vunpack.c.h.b16 %v305
          %v378 = vunpack.c.l.b16 %v306
          %v379 = vunpack.c.h.b16 %v306
          %v380 = vunpack.c.l.b16 %v307
          %v381 = vunpack.c.h.b16 %v307
          %v382 = vunpack.c.l.b16 %v308
          %v383 = vunpack.c.h.b16 %v308
          %v384 = vunpack.c.l.b16 %v309
          %v385 = vunpack.c.h.b16 %v309
          %v386 = vunpack.c.l.b16 %v310
          %v387 = vunpack.c.h.b16 %v310
          %v388 = vunpack.c.l.b16 %v311
          %v389 = vunpack.c.h.b16 %v311
          %v390 = vunpack.c.l.b16 %v312
          %v391 = vunpack.c.h.b16 %v312
          %v392 = vunpack.c.l.b16 %v313
          %v393 = vunpack.c.h.b16 %v313
          %v394 = vpack.c.b16 %v364, %v362
          %v395 = vpack.c.b16 %v365, %v363
          %v396 = vpack.c.b16 %v368, %v366
          %v397 = vpack.c.b16 %v369, %v367
          %v398 = vpack.c.b16 %v372, %v370
          %v399 = vpack.c.b16 %v373, %v371
          %v400 = vpack.c.b16 %v376, %v374
          %v401 = vpack.c.b16 %v377, %v375
          %v402 = vpack.c.b16 %v380, %v378
          %v403 = vpack.c.b16 %v381, %v379
          %v404 = vpack.c.b16 %v384, %v382
          %v405 = vpack.c.b16 %v385, %v383
          %v406 = vpack.c.b16 %v388, %v386
          %v407 = vpack.c.b16 %v389, %v387
          %v408 = vpack.c.b16 %v392, %v390
          %v409 = vpack.c.b16 %v393, %v391
          %v458 = vunpack.c.l.b16 %v314
          %v459 = vunpack.c.l.b16 %v315
          %v460 = vunpack.c.l.b16 %v316
          %v461 = vunpack.c.l.b16 %v317
          %v462 = vunpack.c.l.b16 %v318
          %v463 = vunpack.c.l.b16 %v319
          %v464 = vunpack.c.l.b16 %v320
          %v465 = vunpack.c.l.b16 %v321
          %v466 = vunpack.c.l.b16 %v322
          %v467 = vunpack.c.l.b16 %v323
          %v468 = vunpack.c.l.b16 %v324
          %v469 = vunpack.c.l.b16 %v325
          %v470 = vunpack.c.l.b16 %v326
          %v471 = vunpack.c.l.b16 %v327
          %v472 = vunpack.c.l.b16 %v328
          %v473 = vunpack.c.l.b16 %v329
          %v474 = vunpack.c.l.b16 %v330
          %v475 = vunpack.c.l.b16 %v331
          %v476 = vunpack.c.l.b16 %v332
          %v477 = vunpack.c.l.b16 %v333
          %v478 = vunpack.c.l.b16 %v334
          %v479 = vunpack.c.l.b16 %v335
          %v480 = vunpack.c.l.b16 %v336
          %v481 = vunpack.c.l.b16 %v337
          %v482 = vunpack.c.l.b16 %v338
          %v483 = vunpack.c.l.b16 %v339
          %v484 = vunpack.c.l.b16 %v340
          %v485 = vunpack.c.l.b16 %v341
          %v486 = vunpack.c.l.b16 %v342
          %v487 = vunpack.c.l.b16 %v343
          %v488 = vunpack.c.l.b16 %v344
          %v489 = vunpack.c.l.b16 %v345
          %v490 = vpack.c.b16 %v459, %v458
          %v491 = vpack.c.b16 %v461, %v460
          %v492 = vpack.c.b16 %v463, %v462
          %v493 = vpack.c.b16 %v465, %v464
          %v494 = vpack.c.b16 %v467, %v466
          %v495 = vpack.c.b16 %v469, %v468
          %v496 = vpack.c.b16 %v471, %v470
          %v497 = vpack.c.b16 %v473, %v472
          %v498 = vpack.c.b16 %v475, %v474
          %v499 = vpack.c.b16 %v477, %v476
          %v500 = vpack.c.b16 %v479, %v478
          %v501 = vpack.c.b16 %v481, %v480
          %v502 = vpack.c.b16 %v483, %v482
          %v503 = vpack.c.b16 %v485, %v484
          %v504 = vpack.c.b16 %v487, %v486
          %v505 = vpack.c.b16 %v489, %v488
          %522 = vmatpush.bf16.msra.mxu0 %v497
          %523 = vmatpush.bf16.msra.mxu0 %v496
          %524 = vmatpush.bf16.msra.mxu0 %v495
          %525 = vmatpush.bf16.msra.mxu0 %v494
          %526 = vmatpush.bf16.msra.mxu0 %v493
          %527 = vmatpush.bf16.msra.mxu0 %v492
          %528 = vmatpush.bf16.msra.mxu0 %v491
          %529 = vmatpush.bf16.msra.mxu0 %v490
          %530 = vmatmul.bf16.gmra.mxu0 %v394
          %v531 = vpop.f32.mrf.mxu0
          %v532 = vadd.f32 0.0, %v531
          %v533 = vpop.f32.mrf.mxu0
          %v534 = vadd.f32 0.0, %v533
          %535 = vmatmul.bf16.gmra.mxu0 %v396
          %v536 = vpop.f32.mrf.mxu0
          %v537 = vadd.f32 0.0, %v536
          %v538 = vpop.f32.mrf.mxu0
          %v539 = vadd.f32 0.0, %v538
          %540 = vmatmul.bf16.gmra.mxu0 %v398
          %v541 = vpop.f32.mrf.mxu0
          %v542 = vadd.f32 0.0, %v541
          %v543 = vpop.f32.mrf.mxu0
          %v544 = vadd.f32 0.0, %v543
          %545 = vmatmul.bf16.gmra.mxu0 %v400
          %v546 = vpop.f32.mrf.mxu0
          %v547 = vadd.f32 0.0, %v546
          %v548 = vpop.f32.mrf.mxu0
          %v549 = vadd.f32 0.0, %v548
          %550 = vmatmul.bf16.gmra.mxu0 %v402
          %v551 = vpop.f32.mrf.mxu0
          %v552 = vadd.f32 0.0, %v551
          %v553 = vpop.f32.mrf.mxu0
          %v554 = vadd.f32 0.0, %v553
          %555 = vmatmul.bf16.gmra.mxu0 %v404
          %v556 = vpop.f32.mrf.mxu0
          %v557 = vadd.f32 0.0, %v556
          %v558 = vpop.f32.mrf.mxu0
          %v559 = vadd.f32 0.0, %v558
          %560 = vmatmul.bf16.gmra.mxu0 %v406
          %v561 = vpop.f32.mrf.mxu0
          %v562 = vadd.f32 0.0, %v561
          %v563 = vpop.f32.mrf.mxu0
          %v564 = vadd.f32 0.0, %v563
          %565 = vmatmul.bf16.gmra.mxu0 %v408
          %v566 = vpop.f32.mrf.mxu0
          %v567 = vadd.f32 0.0, %v566
          %v568 = vpop.f32.mrf.mxu0
          %v569 = vadd.f32 0.0, %v568
          %570 = vdwg.mxu0
          %571 = vmatpush.bf16.msra.mxu0 %v505
          %572 = vmatpush.bf16.msra.mxu0 %v504
          %573 = vmatpush.bf16.msra.mxu0 %v503
          %574 = vmatpush.bf16.msra.mxu0 %v502
          %575 = vmatpush.bf16.msra.mxu0 %v501
          %576 = vmatpush.bf16.msra.mxu0 %v500
          %577 = vmatpush.bf16.msra.mxu0 %v499
          %578 = vmatpush.bf16.msra.mxu0 %v498
          %579 = vmatmul.bf16.gmra.mxu0 %v395
          %v580 = vpop.f32.mrf.mxu0
          %v581 = vadd.f32 %v532, %v580
          %v582 = vpop.f32.mrf.mxu0
          %v583 = vadd.f32 %v534, %v582
          %584 = vmatmul.bf16.gmra.mxu0 %v397
          %v585 = vpop.f32.mrf.mxu0
          %v586 = vadd.f32 %v537, %v585
          %v587 = vpop.f32.mrf.mxu0
          %v588 = vadd.f32 %v539, %v587
          %589 = vmatmul.bf16.gmra.mxu0 %v399
          %v590 = vpop.f32.mrf.mxu0
          %v591 = vadd.f32 %v542, %v590
          %v592 = vpop.f32.mrf.mxu0
          %v593 = vadd.f32 %v544, %v592
          %594 = vmatmul.bf16.gmra.mxu0 %v401
          %v595 = vpop.f32.mrf.mxu0
          %v596 = vadd.f32 %v547, %v595
          %v597 = vpop.f32.mrf.mxu0
          %v598 = vadd.f32 %v549, %v597
          %599 = vmatmul.bf16.gmra.mxu0 %v403
          %v600 = vpop.f32.mrf.mxu0
          %v601 = vadd.f32 %v552, %v600
          %v602 = vpop.f32.mrf.mxu0
          %v603 = vadd.f32 %v554, %v602
          %604 = vmatmul.bf16.gmra.mxu0 %v405
          %v605 = vpop.f32.mrf.mxu0
          %v606 = vadd.f32 %v557, %v605
          %v607 = vpop.f32.mrf.mxu0
          %v608 = vadd.f32 %v559, %v607
          %609 = vmatmul.bf16.gmra.mxu0 %v407
          %v610 = vpop.f32.mrf.mxu0
          %v611 = vadd.f32 %v562, %v610
          %v612 = vpop.f32.mrf.mxu0
          %v613 = vadd.f32 %v564, %v612
          %614 = vmatmul.bf16.gmra.mxu0 %v409
          %v615 = vpop.f32.mrf.mxu0
          %v616 = vadd.f32 %v567, %v615
          %v617 = vpop.f32.mrf.mxu0
          %v618 = vadd.f32 %v569, %v617
          %619 = vdwg.mxu0
          %v620 = vld [vmem:[%s258] sm:$0xff]
          %v621 = vld [vmem:[%s258 + $0x8] sm:$0xff]
          %v622 = vld [vmem:[%s258 + $0x10] sm:$0xff]
          %v623 = vld [vmem:[%s258 + $0x18] sm:$0xff]
          %v624 = vld [vmem:[%s258 + $0x20] sm:$0xff]
          %v625 = vld [vmem:[%s258 + $0x28] sm:$0xff]
          %v626 = vld [vmem:[%s258 + $0x30] sm:$0xff]
          %v627 = vld [vmem:[%s258 + $0x38] sm:$0xff]
          %v628 = vld [vmem:[%s258 + $0x40] sm:$0xff]
          %v629 = vld [vmem:[%s258 + $0x48] sm:$0xff]
          %v630 = vld [vmem:[%s258 + $0x50] sm:$0xff]
          %v631 = vld [vmem:[%s258 + $0x58] sm:$0xff]
          %v632 = vld [vmem:[%s258 + $0x60] sm:$0xff]
          %v633 = vld [vmem:[%s258 + $0x68] sm:$0xff]
          %v634 = vld [vmem:[%s258 + $0x70] sm:$0xff]
          %v635 = vld [vmem:[%s258 + $0x78] sm:$0xff]
          %v636 = vld [vmem:[%s264] sm:$0xff]
          %v637 = vld [vmem:[%s264 + $0x8] sm:$0xff]
          %vm638 = vcmask 130048
          %v640 = vsel %vm638, %v581, 0
          %v643 = vsel %vm638, %v583, 0
          %v646 = vsel %vm638, %v586, 0
          %v649 = vsel %vm638, %v588, 0
          %v652 = vsel %vm638, %v591, 0
          %v655 = vsel %vm638, %v593, 0
          %v658 = vsel %vm638, %v596, 0
          %v661 = vsel %vm638, %v598, 0
          %v664 = vsel %vm638, %v601, 0
          %v667 = vsel %vm638, %v603, 0
          %v670 = vsel %vm638, %v606, 0
          %v673 = vsel %vm638, %v608, 0
          %v676 = vsel %vm638, %v611, 0
          %v679 = vsel %vm638, %v613, 0
          %v682 = vsel %vm638, %v616, 0
          %v685 = vsel %vm638, %v618, 0
          %687 = vmatpush.msra.mxu0 0.0
          %688 = vmatpush.msra.mxu0 0.0
          %689 = vmatpush.msra.mxu0 0.0
          %690 = vmatpush.msra.mxu0 0.0
          %691 = vmatpush.msra.mxu0 0.0
          %692 = vmatpush.msra.mxu0 0.0
          %693 = vmatpush.msra.mxu0 0.0
          %694 = vmatpush.msra.mxu0 0.0
          %695 = vmatpush.msra.mxu0 0.0
          %696 = vmatpush.msra.mxu0 0.0
          %697 = vmatpush.msra.mxu0 0.0
          %698 = vmatpush.msra.mxu0 0.0
          %699 = vmatpush.msra.mxu0 0.0
          %700 = vmatpush.msra.mxu0 0.0
          %701 = vmatpush.msra.mxu0 %v637
          %702 = vmatpush.msra.mxu0 %v636
          %703 = vmatmul.f32.gmra.mxu0 %v640
          %v704 = vpop.f32.mrf.mxu0
          %v705 = vadd.f32 0.0, %v704
          %706 = vmatmul.f32.gmra.mxu0 %v643
          %v707 = vpop.f32.mrf.mxu0
          %v708 = vadd.f32 0.0, %v707
          %709 = vmatmul.f32.gmra.mxu0 %v646
          %v710 = vpop.f32.mrf.mxu0
          %v711 = vadd.f32 0.0, %v710
          %712 = vmatmul.f32.gmra.mxu0 %v649
          %v713 = vpop.f32.mrf.mxu0
          %v714 = vadd.f32 0.0, %v713
          %715 = vmatmul.f32.gmra.mxu0 %v652
          %v716 = vpop.f32.mrf.mxu0
          %v717 = vadd.f32 0.0, %v716
          %718 = vmatmul.f32.gmra.mxu0 %v655
          %v719 = vpop.f32.mrf.mxu0
          %v720 = vadd.f32 0.0, %v719
          %721 = vmatmul.f32.gmra.mxu0 %v658
          %v722 = vpop.f32.mrf.mxu0
          %v723 = vadd.f32 0.0, %v722
          %724 = vmatmul.f32.gmra.mxu0 %v661
          %v725 = vpop.f32.mrf.mxu0
          %v726 = vadd.f32 0.0, %v725
          %727 = vmatmul.f32.gmra.mxu0 %v664
          %v728 = vpop.f32.mrf.mxu0
          %v729 = vadd.f32 0.0, %v728
          %730 = vmatmul.f32.gmra.mxu0 %v667
          %v731 = vpop.f32.mrf.mxu0
          %v732 = vadd.f32 0.0, %v731
          %733 = vmatmul.f32.gmra.mxu0 %v670
          %v734 = vpop.f32.mrf.mxu0
          %v735 = vadd.f32 0.0, %v734
          %736 = vmatmul.f32.gmra.mxu0 %v673
          %v737 = vpop.f32.mrf.mxu0
          %v738 = vadd.f32 0.0, %v737
          %739 = vmatmul.f32.gmra.mxu0 %v676
          %v740 = vpop.f32.mrf.mxu0
          %v741 = vadd.f32 0.0, %v740
          %742 = vmatmul.f32.gmra.mxu0 %v679
          %v743 = vpop.f32.mrf.mxu0
          %v744 = vadd.f32 0.0, %v743
          %745 = vmatmul.f32.gmra.mxu0 %v682
          %v746 = vpop.f32.mrf.mxu0
          %v747 = vadd.f32 0.0, %v746
          %748 = vmatmul.f32.gmra.mxu0 %v685
          %v749 = vpop.f32.mrf.mxu0
          %v750 = vadd.f32 0.0, %v749
          %751 = vdwg.mxu0
          %v752 = vadd.f32 %v620, %v705
          %v753 = vadd.f32 %v621, %v708
          %v754 = vadd.f32 %v622, %v711
          %v755 = vadd.f32 %v623, %v714
          %v756 = vadd.f32 %v624, %v717
          %v757 = vadd.f32 %v625, %v720
          %v758 = vadd.f32 %v626, %v723
          %v759 = vadd.f32 %v627, %v726
          %v760 = vadd.f32 %v628, %v729
          %v761 = vadd.f32 %v629, %v732
          %v762 = vadd.f32 %v630, %v735
          %v763 = vadd.f32 %v631, %v738
          %v764 = vadd.f32 %v632, %v741
          %v765 = vadd.f32 %v633, %v744
          %v766 = vadd.f32 %v634, %v747
          %v767 = vadd.f32 %v635, %v750
          %768 = vst [vmem:[%s258] sm:$0xff] %v752
          %769 = vst [vmem:[%s258 + $0x8] sm:$0xff] %v753
          %770 = vst [vmem:[%s258 + $0x10] sm:$0xff] %v754
          %771 = vst [vmem:[%s258 + $0x18] sm:$0xff] %v755
          %772 = vst [vmem:[%s258 + $0x20] sm:$0xff] %v756
          %773 = vst [vmem:[%s258 + $0x28] sm:$0xff] %v757
          %774 = vst [vmem:[%s258 + $0x30] sm:$0xff] %v758
          %775 = vst [vmem:[%s258 + $0x38] sm:$0xff] %v759
          %776 = vst [vmem:[%s258 + $0x40] sm:$0xff] %v760
          %777 = vst [vmem:[%s258 + $0x48] sm:$0xff] %v761
          %778 = vst [vmem:[%s258 + $0x50] sm:$0xff] %v762
          %779 = vst [vmem:[%s258 + $0x58] sm:$0xff] %v763
          %780 = vst [vmem:[%s258 + $0x60] sm:$0xff] %v764
          %781 = vst [vmem:[%s258 + $0x68] sm:$0xff] %v765
          %782 = vst [vmem:[%s258 + $0x70] sm:$0xff] %v766
          %783 = vst [vmem:[%s258 + $0x78] sm:$0xff] %v767
        $region48: #{tpu_custom_call.1} parent=35 // pred_fallthru
          _
        %p784 = scmp.eq.s32.totalorder %s35, 3
        // Predicated region
        $region49: #{tpu_custom_call.1} parent=35 // pred_check
          %p785 = pneg %p784
        $region50: #{tpu_custom_call.1} parent=35 // pred_check_branch
          %787 = sbr.rel (%p785) target = $region52
        $region51: #{tpu_custom_call.1} parent=35 // pred_region
          %v788 = vld [vmem:[%s258] sm:$0xff]
          %v789 = vld [vmem:[%s258 + $0x8] sm:$0xff]
          %v790 = vld [vmem:[%s258 + $0x10] sm:$0xff]
          %v791 = vld [vmem:[%s258 + $0x18] sm:$0xff]
          %v792 = vld [vmem:[%s258 + $0x20] sm:$0xff]
          %v793 = vld [vmem:[%s258 + $0x28] sm:$0xff]
          %v794 = vld [vmem:[%s258 + $0x30] sm:$0xff]
          %v795 = vld [vmem:[%s258 + $0x38] sm:$0xff]
          %v796 = vld [vmem:[%s258 + $0x40] sm:$0xff]
          %v797 = vld [vmem:[%s258 + $0x48] sm:$0xff]
          %v798 = vld [vmem:[%s258 + $0x50] sm:$0xff]
          %v799 = vld [vmem:[%s258 + $0x58] sm:$0xff]
          %v800 = vld [vmem:[%s258 + $0x60] sm:$0xff]
          %v801 = vld [vmem:[%s258 + $0x68] sm:$0xff]
          %v802 = vld [vmem:[%s258 + $0x70] sm:$0xff]
          %v803 = vld [vmem:[%s258 + $0x78] sm:$0xff]
          %v804 = vld [vmem:[%s4] sm:$0x1]
          %v806 = vperm.slane %v804, 0
          %v808 = vadd.f32 %v788, %v806
          %v809 = vadd.f32 %v789, %v806
          %v810 = vadd.f32 %v790, %v806
          %v811 = vadd.f32 %v791, %v806
          %v812 = vadd.f32 %v792, %v806
          %v813 = vadd.f32 %v793, %v806
          %v814 = vadd.f32 %v794, %v806
          %v815 = vadd.f32 %v795, %v806
          %v816 = vadd.f32 %v796, %v806
          %v817 = vadd.f32 %v797, %v806
          %v818 = vadd.f32 %v798, %v806
          %v819 = vadd.f32 %v799, %v806
          %v820 = vadd.f32 %v800, %v806
          %v821 = vadd.f32 %v801, %v806
          %v822 = vadd.f32 %v802, %v806
          %v823 = vadd.f32 %v803, %v806
          %v824 = vmax.f32 %v808, 0.0
          %v825 = vmax.f32 %v809, 0.0
          %v826 = vmax.f32 %v810, 0.0
          %v827 = vmax.f32 %v811, 0.0
          %v828 = vmax.f32 %v812, 0.0
          %v829 = vmax.f32 %v813, 0.0
          %v830 = vmax.f32 %v814, 0.0
          %v831 = vmax.f32 %v815, 0.0
          %v832 = vmax.f32 %v816, 0.0
          %v833 = vmax.f32 %v817, 0.0
          %v834 = vmax.f32 %v818, 0.0
          %v835 = vmax.f32 %v819, 0.0
          %v836 = vmax.f32 %v820, 0.0
          %v837 = vmax.f32 %v821, 0.0
          %v838 = vmax.f32 %v822, 0.0
          %v839 = vmax.f32 %v823, 0.0
          %840 = vst [vmem:[%s258] sm:$0xff] %v824
          %841 = vst [vmem:[%s258 + $0x8] sm:$0xff] %v825
          %842 = vst [vmem:[%s258 + $0x10] sm:$0xff] %v826
          %843 = vst [vmem:[%s258 + $0x18] sm:$0xff] %v827
          %844 = vst [vmem:[%s258 + $0x20] sm:$0xff] %v828
          %845 = vst [vmem:[%s258 + $0x28] sm:$0xff] %v829
          %846 = vst [vmem:[%s258 + $0x30] sm:$0xff] %v830
          %847 = vst [vmem:[%s258 + $0x38] sm:$0xff] %v831
          %848 = vst [vmem:[%s258 + $0x40] sm:$0xff] %v832
          %849 = vst [vmem:[%s258 + $0x48] sm:$0xff] %v833
          %850 = vst [vmem:[%s258 + $0x50] sm:$0xff] %v834
          %851 = vst [vmem:[%s258 + $0x58] sm:$0xff] %v835
          %852 = vst [vmem:[%s258 + $0x60] sm:$0xff] %v836
          %853 = vst [vmem:[%s258 + $0x68] sm:$0xff] %v837
          %854 = vst [vmem:[%s258 + $0x70] sm:$0xff] %v838
          %855 = vst [vmem:[%s258 + $0x78] sm:$0xff] %v839
        $region52: #{tpu_custom_call.1} parent=35 // pred_fallthru
          _
        %s856 = sand.u32 %s146, 1
        %s857 = scalar_lea.sflag [#allocation6], %s856
        %s858 = sand.u32 %s146, 1
        %s859 = smul.addr %s858, 128
        %s860 = scalar_lea.vmem [#allocation7], %s859
        // Predicated region
        $region53: #{tpu_custom_call.1} parent=35 // pred_check
          %p861 = pneg %p156
        $region54: #{tpu_custom_call.1} parent=35 // pred_check_branch
          %863 = sbr.rel (%p861) target = $region56
        $region55: #{tpu_custom_call.1} parent=35 // pred_region
          %s864 = smul.u32 16, %s34
          %866 = vsyncadd %s857, 0
          %s867 = smul.addr %s864, 8
          %s868 = scalar_lea.hbm %s5, %s867
          %s869 = sshll.u32 %s860, 4
          %s870 = int_to_ptr.vmem [resolvable:$true] %s869
          %s871 = sshll.u32 %s868, 4
          %s872 = int_to_ptr.hbm [resolvable:$true] %s871
          %877 = dma.vmem_to_hbm [thread:$0]  %s870, 2048, %s872, %s857, 128, 128, 8
        $region56: #{tpu_custom_call.1} parent=35 // pred_fallthru
          _
      $region36: #{tpu_custom_call.1} parent=5 // pred_fallthru
        _
      %p878 = scmp.le.s32.totalorder 2, %s25
      // Predicated region
      $region57: #{tpu_custom_call.1} parent=5 // pred_check
        %p879 = pneg %p878
      $region58: #{tpu_custom_call.1} parent=5 // pred_check_branch
        %881 = sbr.rel (%p879) target = $region60
      $region59: #{tpu_custom_call.1} parent=5 // pred_region
        %s882 = ssub.s32 %s25, 2
        // Predicated region
        $region61: #{tpu_custom_call.1} parent=59 // pred_check
          %p883 = pneg %p162
        $region62: #{tpu_custom_call.1} parent=59 // pred_check_branch
          %885 = sbr.rel (%p883) target = $region64
        $region63: #{tpu_custom_call.1} parent=59 // pred_region
          %s886 = sand.u32 %s147, 1
          %s887 = scalar_lea.sflag [#allocation6], %s886
          %s888 = sand.u32 %s147, 1
          %s889 = smul.addr %s888, 128
          %s890 = scalar_lea.vmem [#allocation7], %s889
          %892 = dma.done %s887, 2048
        $region64: #{tpu_custom_call.1} parent=59 // pred_fallthru
          _
      $region60: #{tpu_custom_call.1} parent=5 // pred_fallthru
        _
    $region6: #{tpu_custom_call.1} parent=1 // loop_footer
      %s29 = sadd.s32 1, %s25
    $region7: #{tpu_custom_call.1} parent=1 // loop_footer_branch
      %24 = sbr.rel target = $region3
    $region8: #{tpu_custom_call.1} parent=1 // loop_exit
      _
    %893 = vsyncpa [#allocation5], 1
    %s894 = scalar_lea.sflag [#allocation5], 1
    %895 = vsyncpa %s894, 1
    %896 = vsyncpa [#allocation6], 1
    %s897 = scalar_lea.sflag [#allocation6], 1
    %898 = vsyncpa %s897, 1

</llo_original>
